<compile_context>
chip_gen: v7x
topology: tpu7x:2x2x1
jax: 0.10.0
libtpu: 0.0.40
codegen_flags: <defaults>
</compile_context>

<pallas_src>
import jax
import jax.numpy as jnp
from jax.experimental import pallas as pl
from jax.experimental.pallas import tpu as pltpu


def _round_up(n, m):
    return ((n + m - 1) // m) * m


def _choose_tiles(M, C_in, H, itemsize, block_rows=None):
    """Pick (tm, chunk): tm = rows per grid step, chunk = rows per inner pass.

    tm targets a ~1-4 us per-step input DMA (amortizes the ~0.35 us
    per-grid-step overhead, keeps the kernel at the HBM roofline) while the
    double-buffered x stream + (H, chunk) f32 intermediate + double-buffered
    output stay under the scoped-VMEM defaults on every generation.
    """
    # Inner chunk: keep the (H, chunk) f32 intermediate <= ~1 MiB, cap 2048.
    chunk_max = max(128, min(2048, ((1 << 20) // (4 * H)) // 128 * 128))
    M128 = _round_up(M, 128)

    # Best-effort generation detection: v7x has 64 MiB physical VMEM and
    # ~3.2 TB/s HBM -> bigger tiles; v5e/v6e (128 MiB physical) use 16k rows.
    try:
        phys_vmem = int(getattr(pltpu.get_tpu_info(), "vmem_capacity_bytes", 0))
    except Exception:
        phys_vmem = 0
    is_v7x = 0 < phys_vmem <= (64 << 20)

    if block_rows is None:
        if is_v7x:
            target_rows, x_budget = 32768, 12 << 20   # < 32 MiB scoped default
        else:  # v5e / v6e / unknown: conservative (fits v5e 16 MiB scoped)
            target_rows, x_budget = 16384, 10 << 20
    else:
        target_rows, x_budget = max(128, int(block_rows)), 10 << 20

    # VMEM cap on the double-buffered x input stream.
    cap_rows = max(128, (x_budget // (2 * C_in * itemsize)) // 128 * 128)
    tm = min(_round_up(target_rows, 128), cap_rows, M128)

    if tm <= chunk_max:
        chunk = tm
    else:
        chunk = chunk_max
        tm = max(chunk, (tm // chunk) * chunk)

    # v7x has 2 TensorCores: for large problems prefer >=4 "parallel" grid
    # steps (>=2 per core) so each core keeps DMA/compute overlap.  On
    # v5e/v6e (1 core) splitting would only add per-step overhead, so skip.
    if block_rows is None and is_v7x and M > 4 * chunk and pl.cdiv(M, tm) < 4:
        tm_split = _round_up(pl.cdiv(M, 4), chunk)
        tm = max(chunk, min(tm, tm_split))

    return tm, chunk


def _make_head_pp_kernel(chunk, n_chunks, c_out_is_one):
    """Fused linear1 + bias + ReLU + linear2 + bias + sigmoid kernel."""

    def kernel(x_ref, w1_ref, b1_ref, w2_ref, b2_ref, o_ref):
        # x_ref:  (TM, C_in)   row tile of flattened tokens (last block ragged)
        # w1_ref: (H, C_in)    linear_1.weight (PyTorch layout)
        # b1_ref: (H, 1)       linear_1.bias
        # w2_ref: (H, 1) if C_out == 1 else (C_out, H)
        # b2_ref: (1,) SMEM scalar if C_out == 1 else (C_out, 1) VMEM
        # o_ref:  (C_out, TM)  transposed, lane-dense output tile
        w1 = w1_ref[...]
        b1 = b1_ref[...].astype(jnp.float32)
        if c_out_is_one:
            w2 = w2_ref[...].astype(jnp.float32)        # (H, 1)
            b2 = b2_ref[0].astype(jnp.float32)          # SMEM scalar
        else:
            w2 = w2_ref[...]                            # (C_out, H)
            b2 = b2_ref[...].astype(jnp.float32)        # (C_out, 1)

        def compute(xb):
            # h = W1 @ x_blk^T : contract on C_in so the token dimension lands
            # on the 128-lane axis of h and of the output (full, unmasked
            # lane-dense stores).
            h = jax.lax.dot_general(
                w1, xb, dimension_numbers=(((1,), (1,)), ((), ())),
                preferred_element_type=jnp.float32)      # (H, chunk)
            h = jnp.maximum(h + b1, 0.0)                 # bias + ReLU
            # TODO(synk): nn.Dropout(p) is identity at inference; training-mode
            # dropout (random mask + 1/(1-p) scaling) is not reproduced here.
            if c_out_is_one:
                # A (1,H)x(H,chunk) matvec would waste the MXU and add an MRF
                # drain; do it on the VPU (multiply) + XLU (sublane reduce).
                y = jnp.sum(h * w2, axis=0, keepdims=True)        # (1, chunk)
            else:
                y = jnp.dot(w2, h, preferred_element_type=jnp.float32)
            return jax.nn.sigmoid(y + b2)

        if n_chunks == 1:
            o_ref[...] = compute(x_ref[...]).astype(o_ref.dtype)
        else:
            def step(c, carry):
                r0 = pl.multiple_of(c * chunk, chunk)
                xb = x_ref[pl.ds(r0, chunk), :]
                o_ref[:, pl.ds(r0, chunk)] = compute(xb).astype(o_ref.dtype)
                return carry

            jax.lax.fori_loop(0, n_chunks, step, 0, unroll=True)

    return kernel


def head_pp_forward(x, w1, b1, w2, b2, *, block_rows=None):
    """Fused Head_pp forward: sigmoid(relu(x @ W1^T + b1) @ W2^T + b2).squeeze().

    x:  (B, T, C_in)
    w1: (H, C_in)   b1: (H,)      -- PyTorch nn.Linear layouts
    w2: (C_out, H)  b2: (C_out,)

    Note: nn.Dropout is treated as identity (inference mode); training-mode
    dropout (random mask + 1/(1-p) scaling) is not implemented.
    """
    B, T, C_in = x.shape
    H, C_in_w = w1.shape
    assert C_in_w == C_in, (w1.shape, C_in)
    C_out = w2.shape[0]
    assert w2.shape == (C_out, H), (w2.shape, (C_out, H))
    M = B * T
    itemsize = jnp.dtype(x.dtype).itemsize

    tm, chunk = _choose_tiles(M, C_in, H, itemsize, block_rows)
    n_chunks = tm // chunk
    grid = (pl.cdiv(M, tm),)          # ragged last block; no wrapper-side pad

    x2d = x.reshape(M, C_in)          # metadata-only reshape, no HBM copy
    b1c = b1.reshape(H, 1)

    c_out_is_one = (C_out == 1)
    if c_out_is_one:
        w2_arg = w2.reshape(H, 1)     # transposed matvec weight
        b2_arg = b2.reshape(1)
        w2_spec = pl.BlockSpec((H, 1), lambda i: (0, 0))
        b2_spec = pl.BlockSpec(memory_space=pltpu.MemorySpace.SMEM)   # scalar
    else:
        w2_arg = w2
        b2_arg = b2.reshape(C_out, 1)
        w2_spec = pl.BlockSpec((C_out, H), lambda i: (0, 0))
        b2_spec = pl.BlockSpec((C_out, 1), lambda i: (0, 0))

    cost = pl.CostEstimate(
        flops=2 * M * (C_in * H + H * C_out),
        transcendentals=M * C_out,
        bytes_accessed=itemsize * M * (C_in + C_out)
        + 4 * (H * C_in + H + C_out * H + C_out),
    )

    out_t = pl.pallas_call(
        _make_head_pp_kernel(chunk, n_chunks, c_out_is_one),
        out_shape=jax.ShapeDtypeStruct((C_out, M), x.dtype),
        grid_spec=pltpu.PrefetchScalarGridSpec(
            num_scalar_prefetch=0,
            grid=grid,
            in_specs=[
                pl.BlockSpec((tm, C_in), lambda i: (i, 0)),   # x row tile
                pl.BlockSpec((H, C_in), lambda i: (0, 0)),    # W1 (resident)
                pl.BlockSpec((H, 1), lambda i: (0, 0)),       # b1
                w2_spec,                                      # W2 / W2^T
                b2_spec,                                      # b2
            ],
            out_specs=pl.BlockSpec((C_out, tm), lambda i: (0, i)),
        ),
        compiler_params=pltpu.CompilerParams(
            dimension_semantics=("parallel",),
        ),
        cost_estimate=cost,
    )(x2d, w1, b1c, w2_arg, b2_arg)

    out = out_t.T.reshape(B, T, C_out)   # tiny layout fixup (C_out * M elems)
    return jnp.squeeze(out)              # mirrors torch .squeeze()


def xavier_uniform(key, out_features, in_features, dtype=jnp.float32):
    # matches torch.nn.init.xavier_uniform_ (gain=1) on an
    # (out_features, in_features) nn.Linear weight
    limit = float(jnp.sqrt(6.0 / (in_features + out_features)))
    return jax.random.uniform(key, (out_features, in_features), dtype=dtype,
                              minval=-limit, maxval=limit)


if __name__ == "__main__":
    key = jax.random.PRNGKey(0)
    k_x, k_w1, k_w2, k_x2, k_x3, k_w2b = jax.random.split(key, 6)

    # Small shapes consistent with Head_pp's (B, T, C) input.
    B, T = 2, 8
    in_ch, hid_ch, out_ch = 32, 64, 1

    x = jax.random.normal(k_x, (B, T, in_ch), dtype=jnp.float32)
    w1 = xavier_uniform(k_w1, hid_ch, in_ch)     # (hid, in)  torch layout
    b1 = jnp.zeros((hid_ch,), jnp.float32)
    w2 = xavier_uniform(k_w2, out_ch, hid_ch)    # (out, hid) torch layout
    b2 = jnp.zeros((out_ch,), jnp.float32)

    def ref_fwd(xx, ww1, bb1, ww2, bb2):
        return jax.nn.sigmoid(
            jnp.maximum(xx @ ww1.T + bb1, 0.0) @ ww2.T + bb2).squeeze()

    # 1) Basic small case (single grid step, single chunk, C_out == 1 path).
    out = jax.block_until_ready(head_pp_forward(x, w1, b1, w2, b2))
    assert out.shape == (B, T), out.shape
    assert jnp.allclose(out, ref_fwd(x, w1, b1, w2, b2), atol=1e-5, rtol=1e-5)

    # 2) Ragged M (B*T not a multiple of 128): exercises the masked last block
    #    without any wrapper-side padding.
    B2, T2 = 3, 500
    x2 = jax.random.normal(k_x2, (B2, T2, in_ch), dtype=jnp.float32)
    out2 = jax.block_until_ready(head_pp_forward(x2, w1, b1, w2, b2))
    assert out2.shape == (B2, T2), out2.shape
    assert jnp.allclose(out2, ref_fwd(x2, w1, b1, w2, b2), atol=1e-5, rtol=1e-5)

    # 3) Multi-step grid + ragged last block (small explicit tile override).
    out2b = jax.block_until_ready(
        head_pp_forward(x2, w1, b1, w2, b2, block_rows=512))
    assert jnp.allclose(out2b, ref_fwd(x2, w1, b1, w2, b2), atol=1e-5, rtol=1e-5)

    # 4) Multi-chunk inner loop + multi-step grid + ragged last block.
    B3, T3 = 4, 1100
    x3 = jax.random.normal(k_x3, (B3, T3, in_ch), dtype=jnp.float32)
    out3 = jax.block_until_ready(
        head_pp_forward(x3, w1, b1, w2, b2, block_rows=4096))
    assert out3.shape == (B3, T3), out3.shape
    assert jnp.allclose(out3, ref_fwd(x3, w1, b1, w2, b2), atol=1e-5, rtol=1e-5)

    # 5) General C_out > 1 path (MXU second matmul, VMEM bias column).
    out_ch2 = 4
    w2b = xavier_uniform(k_w2b, out_ch2, hid_ch)
    b2b = jnp.zeros((out_ch2,), jnp.float32)
    out4 = jax.block_until_ready(head_pp_forward(x, w1, b1, w2b, b2b))
    assert out4.shape == (B, T, out_ch2), out4.shape
    assert jnp.allclose(out4, ref_fwd(x, w1, b1, w2b, b2b), atol=1e-5, rtol=1e-5)

    print("KERNEL_OK")
</pallas_src>

<mosaic_0001>
module attributes {stable_mosaic.version = 11 : i64} {
  func.func @kernel(%arg0: i32, %arg1: memref<128x32xf32, #tpu.memory_space<vmem>>, %arg2: memref<64x32xf32, #tpu.memory_space<vmem>>, %arg3: memref<64x1xf32, #tpu.memory_space<vmem>>, %arg4: memref<64x1xf32, #tpu.memory_space<vmem>>, %arg5: memref<1xf32, #tpu.memory_space<smem>>, %arg6: memref<1x128xf32, #tpu.memory_space<vmem>>) attributes {dimension_semantics = [#tpu.dimension_semantics<parallel>], iteration_bounds = array<i64: 1>, scalar_prefetch = 0 : i64, scratch_operands = 0 : i64, tpu.core_type = #tpu.core_type<tc>, window_params = [{transform_indices = @transform_0, window_bounds = array<i64: 128, 32>}, {pipeline_mode = #tpu.pipeline_mode<synchronous>, transform_indices = @transform_1, window_bounds = array<i64: 64, 32>}, {pipeline_mode = #tpu.pipeline_mode<synchronous>, transform_indices = @transform_2, window_bounds = array<i64: 64, 1>}, {pipeline_mode = #tpu.pipeline_mode<synchronous>, transform_indices = @transform_3, window_bounds = array<i64: 64, 1>}, {transform_indices = @transform_4, window_bounds = array<i64: 1>}, {transform_indices = @transform_5, window_bounds = array<i64: 1, 128>}]} {
    %c0 = arith.constant 0 : index
    %c0_0 = arith.constant 0 : index
    %0 = vector.load %arg2[%c0, %c0_0] : memref<64x32xf32, #tpu.memory_space<vmem>>, vector<64x32xf32>
    %c0_1 = arith.constant 0 : index
    %c0_2 = arith.constant 0 : index
    %1 = vector.load %arg3[%c0_1, %c0_2] : memref<64x1xf32, #tpu.memory_space<vmem>>, vector<64x1xf32>
    %c0_3 = arith.constant 0 : index
    %c0_4 = arith.constant 0 : index
    %2 = vector.load %arg4[%c0_3, %c0_4] : memref<64x1xf32, #tpu.memory_space<vmem>>, vector<64x1xf32>
    %c0_5 = arith.constant 0 : index
    %3 = memref.load %arg5[%c0_5] : memref<1xf32, #tpu.memory_space<smem>>
    %c0_6 = arith.constant 0 : index
    %c0_7 = arith.constant 0 : index
    %4 = vector.load %arg1[%c0_6, %c0_7] : memref<128x32xf32, #tpu.memory_space<vmem>>, vector<128x32xf32>
    %cst = arith.constant dense<0.000000e+00> : vector<64x128xf32>
    %5 = tpu.matmul %0, %4, %cst {dimension_numbers = #tpu.dot_dimension_numbers<[1], [1], [0], [0], [0, 0, 1, 0], [], []>} : vector<64x32xf32>, vector<128x32xf32>, vector<64x128xf32> -> vector<64x128xf32>
    %6 = vector.broadcast %1 : vector<64x1xf32> to vector<64x128xf32>
    %7 = arith.addf %5, %6 : vector<64x128xf32>
    %cst_8 = arith.constant 0.000000e+00 : f32
    %8 = vector.broadcast %cst_8 : f32 to vector<64x128xf32>
    %9 = arith.maximumf %7, %8 : vector<64x128xf32>
    %10 = vector.broadcast %2 : vector<64x1xf32> to vector<64x128xf32>
    %11 = arith.mulf %9, %10 : vector<64x128xf32>
    %cst_9 = arith.constant dense<0.000000e+00> : vector<128xf32>
    %12 = vector.multi_reduction <add>, %11, %cst_9 [0] : vector<64x128xf32> to vector<128xf32>
    %13 = vector.shape_cast %12 : vector<128xf32> to vector<1x128xf32>
    %14 = vector.broadcast %3 : f32 to vector<1x128xf32>
    %15 = arith.addf %13, %14 : vector<1x128xf32>
    %16 = arith.negf %15 : vector<1x128xf32>
    %17 = math.exp %16 : vector<1x128xf32>
    %cst_10 = arith.constant 1.000000e+00 : f32
    %18 = vector.broadcast %cst_10 : f32 to vector<1x128xf32>
    %19 = arith.addf %18, %17 : vector<1x128xf32>
    %20 = arith.divf %18, %19 : vector<1x128xf32>
    %c0_11 = arith.constant 0 : index
    %c0_12 = arith.constant 0 : index
    %21 = vector.load %arg6[%c0_11, %c0_12] : memref<1x128xf32, #tpu.memory_space<vmem>>, vector<1x128xf32>
    tpu.vector_store %arg6[%c0_11, %c0_12], %20 {strides = array<i32>} : memref<1x128xf32, #tpu.memory_space<vmem>>, vector<1x128xf32>,
    return
  }
  func.func @transform_0(%arg0: i32) -> (i32, i32) {
    %c0_i32 = arith.constant 0 : i32
    %c0_i32_0 = arith.constant 0 : i32
    return %arg0, %c0_i32 : i32, i32
  }
  func.func @transform_1(%arg0: i32) -> (i32, i32) {
    %c0_i32 = arith.constant 0 : i32
    %c0_i32_0 = arith.constant 0 : i32
    %c0_i32_1 = arith.constant 0 : i32
    return %c0_i32, %c0_i32_0 : i32, i32
  }
  func.func @transform_2(%arg0: i32) -> (i32, i32) {
    %c0_i32 = arith.constant 0 : i32
    %c0_i32_0 = arith.constant 0 : i32
    %c0_i32_1 = arith.constant 0 : i32
    return %c0_i32, %c0_i32_0 : i32, i32
  }
  func.func @transform_3(%arg0: i32) -> (i32, i32) {
    %c0_i32 = arith.constant 0 : i32
    %c0_i32_0 = arith.constant 0 : i32
    %c0_i32_1 = arith.constant 0 : i32
    return %c0_i32, %c0_i32_0 : i32, i32
  }
  func.func @transform_4(%arg0: i32) -> i32 {
    %c0_i32 = arith.constant 0 : i32
    %c0_i32_0 = arith.constant 0 : i32
    return %c0_i32 : i32
  }
  func.func @transform_5(%arg0: i32) -> (i32, i32) {
    %c0_i32 = arith.constant 0 : i32
    %c0_i32_0 = arith.constant 0 : i32
    return %c0_i32, %arg0 : i32, i32
  }
}

</mosaic_0001>

<llo_original>
// kernel: tpu_custom_call.1
$region0: #{tpu_custom_call.1}
  #allocation0 [shape = 'u32[]', space=smem, size = 0x4, offset = 0x4, fixed_abs, tag = 'smem constant byte address 0x4 - core index']
  #allocation1 [shape = 'u32[144,128]{1,0:T(1,128)}', space=vmem, size = 0x12000, scoped, tag = 'internal scratch']
  #allocation2 [shape = 'f32[1]{0:T(128)S(6)}', space=smem, size = 0x200, scoped, tag = 'scoped memory for tpu_custom_call.1']
  %s0 = inlined_call_operand.vmem [shape: f32[16,32], index: 0, kind: input, shape index: {}]
  %s1 = inlined_call_operand.vmem [shape: f32[64,32], index: 1, kind: input, shape index: {}]
  %s2 = inlined_call_operand.vmem [shape: f32[64,1], index: 2, kind: input, shape index: {}]
  %s3 = inlined_call_operand.vmem [shape: f32[64,1], index: 3, kind: input, shape index: {}]
  %s4 = inlined_call_operand.<no memory space> [shape: f32[1], index: 4, kind: input, shape index: {}]
  %s5 = inlined_call_operand.hbm [shape: f32[1,16], index: 5, kind: output, shape index: {}]
  %s6 = sld [smem:[#allocation0]]
  $region30: #{tpu_custom_call.1} parent=0
    _
  %s8 = ssub.s32 1, %s6
  %s9 = scalar_select 0, %s8, %s6
  %10 = sst [smem:[#allocation2]] %s4
  $region1: #{tpu_custom_call.1} parent=0
    #allocation3 [shape = 'u8[512]{0}', space=vmem, size = 0x400, scoped, tag = 'output window, operand 0, single buffered']
    #allocation4 [shape = 's32[1]{0}', space=sflag, size = 0x4, scoped, tag = 'scoped memory for tpu_custom_call.1']
    %11 = vsyncpa [#allocation4], 0
    // Predicated region
    $region2: #{tpu_custom_call.1} parent=1 // pred_check
      _
    $region3: #{tpu_custom_call.1} parent=1 // pred_check_branch
      %13 = sbr.rel (0) target = $region5
    $region4: #{tpu_custom_call.1} parent=1 // pred_region
      _
    $region5: #{tpu_custom_call.1} parent=1 // pred_fallthru
      _
    // Predicated region
    $region6: #{tpu_custom_call.1} parent=1 // pred_check
      _
    $region7: #{tpu_custom_call.1} parent=1 // pred_check_branch
      %15 = sbr.rel (0) target = $region9
    $region8: #{tpu_custom_call.1} parent=1 // pred_region
      _
    $region9: #{tpu_custom_call.1} parent=1 // pred_fallthru
      _
    // Predicated region
    $region10: #{tpu_custom_call.1} parent=1 // pred_check
      _
    $region11: #{tpu_custom_call.1} parent=1 // pred_check_branch
      %17 = sbr.rel (0) target = $region13
    $region12: #{tpu_custom_call.1} parent=1 // pred_region
      _
    $region13: #{tpu_custom_call.1} parent=1 // pred_fallthru
      _
    // Predicated region
    $region14: #{tpu_custom_call.1} parent=1 // pred_check
      _
    $region15: #{tpu_custom_call.1} parent=1 // pred_check_branch
      %19 = sbr.rel (0) target = $region17
    $region16: #{tpu_custom_call.1} parent=1 // pred_region
      _
    $region17: #{tpu_custom_call.1} parent=1 // pred_fallthru
      _
    // Predicated region
    $region18: #{tpu_custom_call.1} parent=1 // pred_check
      _
    $region19: #{tpu_custom_call.1} parent=1 // pred_check_branch
      %21 = sbr.rel (0) target = $region21
    $region20: #{tpu_custom_call.1} parent=1 // pred_region
      _
    $region21: #{tpu_custom_call.1} parent=1 // pred_fallthru
      _
    %v22 = vld [vmem:[%s1] sm:$0xff]
    %v23 = vld [vmem:[%s1 + $0x8] sm:$0xff]
    %v24 = vld [vmem:[%s1 + $0x10] sm:$0xff]
    %v25 = vld [vmem:[%s1 + $0x18] sm:$0xff]
    %v26 = vld [vmem:[%s1 + $0x20] sm:$0xff]
    %v27 = vld [vmem:[%s1 + $0x28] sm:$0xff]
    %v28 = vld [vmem:[%s1 + $0x30] sm:$0xff]
    %v29 = vld [vmem:[%s1 + $0x38] sm:$0xff]
    %v30 = vld [vmem:[%s2] sm:$0xff]
    %v31 = vld [vmem:[%s2 + $0x8] sm:$0xff]
    %v32 = vld [vmem:[%s2 + $0x10] sm:$0xff]
    %v33 = vld [vmem:[%s2 + $0x18] sm:$0xff]
    %v34 = vld [vmem:[%s2 + $0x20] sm:$0xff]
    %v35 = vld [vmem:[%s2 + $0x28] sm:$0xff]
    %v36 = vld [vmem:[%s2 + $0x30] sm:$0xff]
    %v37 = vld [vmem:[%s2 + $0x38] sm:$0xff]
    %v38 = vld [vmem:[%s3] sm:$0xff]
    %v39 = vld [vmem:[%s3 + $0x8] sm:$0xff]
    %v40 = vld [vmem:[%s3 + $0x10] sm:$0xff]
    %v41 = vld [vmem:[%s3 + $0x18] sm:$0xff]
    %v42 = vld [vmem:[%s3 + $0x20] sm:$0xff]
    %v43 = vld [vmem:[%s3 + $0x28] sm:$0xff]
    %v44 = vld [vmem:[%s3 + $0x30] sm:$0xff]
    %v45 = vld [vmem:[%s3 + $0x38] sm:$0xff]
    %s46 = sld [smem:[#allocation2]]
    %v47 = vld [vmem:[%s0] sm:$0xff]
    %v48 = vld [vmem:[%s0 + $0x8] sm:$0xff]
    %v49 = vld [vmem:[%s0 + $0x10] sm:$0xff]
    %v50 = vld [vmem:[%s0 + $0x18] sm:$0xff]
    %v51 = vld [vmem:[%s0 + $0x20] sm:$0xff]
    %v52 = vld [vmem:[%s0 + $0x28] sm:$0xff]
    %v53 = vld [vmem:[%s0 + $0x30] sm:$0xff]
    %v54 = vld [vmem:[%s0 + $0x38] sm:$0xff]
    %v55 = vld [vmem:[%s0 + $0x40] sm:$0xff]
    %v56 = vld [vmem:[%s0 + $0x48] sm:$0xff]
    %v57 = vld [vmem:[%s0 + $0x50] sm:$0xff]
    %v58 = vld [vmem:[%s0 + $0x58] sm:$0xff]
    %v59 = vld [vmem:[%s0 + $0x60] sm:$0xff]
    %v60 = vld [vmem:[%s0 + $0x68] sm:$0xff]
    %v61 = vld [vmem:[%s0 + $0x70] sm:$0xff]
    %v62 = vld [vmem:[%s0 + $0x78] sm:$0xff]
    %64 = vset.pattern.permute.xlu0 0
    %65 = vperm.xlu0 %64, %v30
    %v66 = vpop.permute.xlu0 %65
    %69 = vset.pattern.permute.xlu0 0
    %70 = vperm.xlu0 %69, %v31
    %v71 = vpop.permute.xlu0 %70
    %74 = vset.pattern.permute.xlu0 0
    %75 = vperm.xlu0 %74, %v32
    %v76 = vpop.permute.xlu0 %75
    %79 = vset.pattern.permute.xlu0 0
    %80 = vperm.xlu0 %79, %v33
    %v81 = vpop.permute.xlu0 %80
    %84 = vset.pattern.permute.xlu0 0
    %85 = vperm.xlu0 %84, %v34
    %v86 = vpop.permute.xlu0 %85
    %89 = vset.pattern.permute.xlu0 0
    %90 = vperm.xlu0 %89, %v35
    %v91 = vpop.permute.xlu0 %90
    %94 = vset.pattern.permute.xlu0 0
    %95 = vperm.xlu0 %94, %v36
    %v96 = vpop.permute.xlu0 %95
    %99 = vset.pattern.permute.xlu0 0
    %100 = vperm.xlu0 %99, %v37
    %v101 = vpop.permute.xlu0 %100
    %vm103 = vcmask 261120
    %v105 = vsel %vm103, %v22, 0
    %v108 = vsel %vm103, %v23, 0
    %v111 = vsel %vm103, %v24, 0
    %v114 = vsel %vm103, %v25, 0
    %v117 = vsel %vm103, %v26, 0
    %v120 = vsel %vm103, %v27, 0
    %v123 = vsel %vm103, %v28, 0
    %v126 = vsel %vm103, %v29, 0
    %v129 = vsel %vm103, %v47, 0
    %v132 = vsel %vm103, %v48, 0
    %v135 = vsel %vm103, %v49, 0
    %v138 = vsel %vm103, %v50, 0
    %v141 = vsel %vm103, %v51, 0
    %v144 = vsel %vm103, %v52, 0
    %v147 = vsel %vm103, %v53, 0
    %v150 = vsel %vm103, %v54, 0
    %v153 = vsel %vm103, %v55, 0
    %v156 = vsel %vm103, %v56, 0
    %v159 = vsel %vm103, %v57, 0
    %v162 = vsel %vm103, %v58, 0
    %v165 = vsel %vm103, %v59, 0
    %v168 = vsel %vm103, %v60, 0
    %v171 = vsel %vm103, %v61, 0
    %v174 = vsel %vm103, %v62, 0
    %176 = vmatprep.subr.mxu0 0.0
    %177 = vmatpush1.xpose.msra.mxu0 %v129
    %178 = vmatprep.subr.mxu0 0.0
    %179 = vmatpush1.xpose.msra.mxu0 %v132
    %180 = vmatprep.subr.mxu0 0.0
    %181 = vmatpush1.xpose.msra.mxu0 %v135
    %182 = vmatprep.subr.mxu0 0.0
    %183 = vmatpush1.xpose.msra.mxu0 %v138
    %184 = vmatprep.subr.mxu0 0.0
    %185 = vmatpush1.xpose.msra.mxu0 %v141
    %186 = vmatprep.subr.mxu0 0.0
    %187 = vmatpush1.xpose.msra.mxu0 %v144
    %188 = vmatprep.subr.mxu0 0.0
    %189 = vmatpush1.xpose.msra.mxu0 %v147
    %190 = vmatprep.subr.mxu0 0.0
    %191 = vmatpush1.xpose.msra.mxu0 %v150
    %192 = vmatprep.subr.mxu0 0.0
    %193 = vmatpush1.xpose.msra.mxu0 %v153
    %194 = vmatprep.subr.mxu0 0.0
    %195 = vmatpush1.xpose.msra.mxu0 %v156
    %196 = vmatprep.subr.mxu0 0.0
    %197 = vmatpush1.xpose.msra.mxu0 %v159
    %198 = vmatprep.subr.mxu0 0.0
    %199 = vmatpush1.xpose.msra.mxu0 %v162
    %200 = vmatprep.subr.mxu0 0.0
    %201 = vmatpush1.xpose.msra.mxu0 %v165
    %202 = vmatprep.subr.mxu0 0.0
    %203 = vmatpush1.xpose.msra.mxu0 %v168
    %204 = vmatprep.subr.mxu0 0.0
    %205 = vmatpush1.xpose.msra.mxu0 %v171
    %206 = vmatprep.subr.mxu0 0.0
    %207 = vmatpush1.xpose.msra.mxu0 %v174
    %208 = vmatprep.subr.mxu0 0.0
    %209 = vmatpush1.xpose.msra.mxu0 0.0
    %210 = vmatprep.subr.mxu0 0.0
    %211 = vmatpush1.xpose.msra.mxu0 0.0
    %212 = vmatprep.subr.mxu0 0.0
    %213 = vmatpush1.xpose.msra.mxu0 0.0
    %214 = vmatprep.subr.mxu0 0.0
    %215 = vmatpush1.xpose.msra.mxu0 0.0
    %216 = vmatprep.subr.mxu0 0.0
    %217 = vmatpush1.xpose.msra.mxu0 0.0
    %218 = vmatprep.subr.mxu0 0.0
    %219 = vmatpush1.xpose.msra.mxu0 0.0
    %220 = vmatprep.subr.mxu0 0.0
    %221 = vmatpush1.xpose.msra.mxu0 0.0
    %222 = vmatprep.subr.mxu0 0.0
    %223 = vmatpush1.xpose.msra.mxu0 0.0
    %224 = vmatprep.subr.mxu0 0.0
    %225 = vmatpush1.xpose.msra.mxu0 0.0
    %226 = vmatprep.subr.mxu0 0.0
    %227 = vmatpush1.xpose.msra.mxu0 0.0
    %228 = vmatprep.subr.mxu0 0.0
    %229 = vmatpush1.xpose.msra.mxu0 0.0
    %230 = vmatprep.subr.mxu0 0.0
    %231 = vmatpush1.xpose.msra.mxu0 0.0
    %232 = vmatprep.subr.mxu0 0.0
    %233 = vmatpush1.xpose.msra.mxu0 0.0
    %234 = vmatprep.subr.mxu0 0.0
    %235 = vmatpush1.xpose.msra.mxu0 0.0
    %236 = vmatprep.subr.mxu0 0.0
    %237 = vmatpush1.xpose.msra.mxu0 0.0
    %238 = vmatprep.subr.mxu0 0.0
    %239 = vmatpush1.xpose.msra.mxu0 0.0
    %240 = vmatprep.mubr.f32.mxu0 0.0
    %241 = vmatmul.mubr.f32.gmra.mrb[0].mxu0 %v105
    %v242 = vpop.f32.mrb[0].mxu0
    %v243 = vadd.f32 %v66, %v242
    %v244 = vpop.f32.mrb[0].mxu0
    %245 = vmatprep.mubr.f32.mxu0 0.0
    %246 = vmatmul.mubr.f32.gmra.mrb[0].mxu0 %v108
    %v247 = vpop.f32.mrb[0].mxu0
    %v248 = vadd.f32 %v71, %v247
    %v249 = vpop.f32.mrb[0].mxu0
    %250 = vmatprep.mubr.f32.mxu0 0.0
    %251 = vmatmul.mubr.f32.gmra.mrb[0].mxu0 %v111
    %v252 = vpop.f32.mrb[0].mxu0
    %v253 = vadd.f32 %v76, %v252
    %v254 = vpop.f32.mrb[0].mxu0
    %255 = vmatprep.mubr.f32.mxu0 0.0
    %256 = vmatmul.mubr.f32.gmra.mrb[0].mxu0 %v114
    %v257 = vpop.f32.mrb[0].mxu0
    %v258 = vadd.f32 %v81, %v257
    %v259 = vpop.f32.mrb[0].mxu0
    %260 = vmatprep.mubr.f32.mxu0 0.0
    %261 = vmatmul.mubr.f32.gmra.mrb[0].mxu0 %v117
    %v262 = vpop.f32.mrb[0].mxu0
    %v263 = vadd.f32 %v86, %v262
    %v264 = vpop.f32.mrb[0].mxu0
    %265 = vmatprep.mubr.f32.mxu0 0.0
    %266 = vmatmul.mubr.f32.gmra.mrb[0].mxu0 %v120
    %v267 = vpop.f32.mrb[0].mxu0
    %v268 = vadd.f32 %v91, %v267
    %v269 = vpop.f32.mrb[0].mxu0
    %270 = vmatprep.mubr.f32.mxu0 0.0
    %271 = vmatmul.mubr.f32.gmra.mrb[0].mxu0 %v123
    %v272 = vpop.f32.mrb[0].mxu0
    %v273 = vadd.f32 %v96, %v272
    %v274 = vpop.f32.mrb[0].mxu0
    %275 = vmatprep.mubr.f32.mxu0 0.0
    %276 = vmatmul.mubr.f32.gmra.mrb[0].mxu0 %v126
    %v277 = vpop.f32.mrb[0].mxu0
    %v278 = vadd.f32 %v101, %v277
    %v279 = vpop.f32.mrb[0].mxu0
    %280 = vdwg.mxu0
    %v281 = vmax.f32 %v243, 0.0
    %v282 = vmax.f32 %v248, 0.0
    %v283 = vmax.f32 %v253, 0.0
    %v284 = vmax.f32 %v258, 0.0
    %v285 = vmax.f32 %v263, 0.0
    %v286 = vmax.f32 %v268, 0.0
    %v287 = vmax.f32 %v273, 0.0
    %v288 = vmax.f32 %v278, 0.0
    %290 = vset.pattern.permute.xlu0 0
    %291 = vperm.xlu0 %290, %v38
    %v292 = vpop.permute.xlu0 %291
    %295 = vset.pattern.permute.xlu0 0
    %296 = vperm.xlu0 %295, %v39
    %v297 = vpop.permute.xlu0 %296
    %300 = vset.pattern.permute.xlu0 0
    %301 = vperm.xlu0 %300, %v40
    %v302 = vpop.permute.xlu0 %301
    %305 = vset.pattern.permute.xlu0 0
    %306 = vperm.xlu0 %305, %v41
    %v307 = vpop.permute.xlu0 %306
    %310 = vset.pattern.permute.xlu0 0
    %311 = vperm.xlu0 %310, %v42
    %v312 = vpop.permute.xlu0 %311
    %315 = vset.pattern.permute.xlu0 0
    %316 = vperm.xlu0 %315, %v43
    %v317 = vpop.permute.xlu0 %316
    %320 = vset.pattern.permute.xlu0 0
    %321 = vperm.xlu0 %320, %v44
    %v322 = vpop.permute.xlu0 %321
    %325 = vset.pattern.permute.xlu0 0
    %326 = vperm.xlu0 %325, %v45
    %v327 = vpop.permute.xlu0 %326
    %v329 = vmul.f32 %v281, %v292
    %v330 = vmul.f32 %v282, %v297
    %v331 = vmul.f32 %v283, %v302
    %v332 = vmul.f32 %v284, %v307
    %v333 = vmul.f32 %v285, %v312
    %v334 = vmul.f32 %v286, %v317
    %v335 = vmul.f32 %v287, %v322
    %v336 = vmul.f32 %v288, %v327
    %v337 = vadd.f32 %v329, %v330
    %v338 = vadd.f32 %v337, %v331
    %v339 = vadd.f32 %v338, %v332
    %v340 = vadd.f32 %v339, %v333
    %v341 = vadd.f32 %v340, %v334
    %v342 = vadd.f32 %v341, %v335
    %v343 = vadd.f32 %v342, %v336
    %v344 = vrot.slane %v343, 4
    %v345 = vadd.f32 %v343, %v344
    %v346 = vrot.slane %v345, 2
    %v347 = vadd.f32 %v345, %v346
    %v348 = vrot.slane %v347, 1
    %v349 = vadd.f32 %v347, %v348
    %v350 = vstv %s46
    %v351 = vadd.f32 %v349, %v350
    %v352 = vxor.u32 %v351, 2147483648
    %v353 = vmul.f32 %v352, 1.442695
    %v354 = vpow.pop %v353
    %v355 = vadd.f32 %v354, 1.0
    %v356 = vrcp.pop %v355
    %v357 = vmul.f32 1.0, %v356
    %358 = vst [vmem:[#allocation3] sm:$0x1] %v357
    // Predicated region
    $region22: #{tpu_custom_call.1} parent=1 // pred_check
      _
    $region23: #{tpu_custom_call.1} parent=1 // pred_check_branch
      %360 = sbr.rel (0) target = $region25
    $region24: #{tpu_custom_call.1} parent=1 // pred_region
      %s362 = ssub.s32 16, 16
      %363 = vsyncadd [#allocation4], %s362
      %s365 = sshll.u32 [#allocation3], 4
      %s366 = int_to_ptr.vmem [resolvable:$true] %s365
      %368 = dma.vmem_to_hbm [thread:$0]  %s366, 16, %s5, [#allocation4]
    $region25: #{tpu_custom_call.1} parent=1 // pred_fallthru
      _
    // Predicated region
    $region26: #{tpu_custom_call.1} parent=1 // pred_check
      _
    $region27: #{tpu_custom_call.1} parent=1 // pred_check_branch
      %370 = sbr.rel (0) target = $region29
    $region28: #{tpu_custom_call.1} parent=1 // pred_region
      %371 = dma.done [#allocation4], 16
    $region29: #{tpu_custom_call.1} parent=1 // pred_fallthru
      _
    %372 = vsyncpa [#allocation4], 1

</llo_original>
